<compile_context>
chip_gen: v7x
topology: tpu7x:2x2x1
jax: 0.10.0
libtpu: 0.0.40
codegen_flags: <defaults>
</compile_context>

<pallas_src>
import functools

import jax
import jax.numpy as jnp
import numpy as np
from jax.experimental import pallas as pl
from jax.experimental.pallas import tpu as pltpu


def _frnn_kernel(tri_ref, pos_ref, center_ref, csq_ref, psq_ref, out_ref,
                 cnt_ref, carry_ref, *, n_valid, K, tN, radius_sq):
    f32 = jnp.float32
    n_idx = pl.program_id(2)

    # --- init accumulators at the start of each (batch, S-tile) sweep -------
    @pl.when(n_idx == 0)
    def _init():
        cnt_ref[...] = jnp.zeros_like(cnt_ref)
        carry_ref[...] = jnp.zeros_like(carry_ref)

    center = center_ref[...]     # (tS, 3)  f32
    csq = csq_ref[...]           # (tS, 1)  f32  |C|^2
    psq = psq_ref[...]           # (1, tN)  f32  |P|^2 for this chunk

    # --- square_distance: -2*C.P + |C|^2 + |P|^2, cross term on the VPU -----
    cross = (center[:, 0:1] * pos_ref[0:1, :]
             + center[:, 1:2] * pos_ref[1:2, :]
             + center[:, 2:3] * pos_ref[2:3, :])                   # (tS, tN)
    sqrdist = -2.0 * cross + csq + psq

    # --- ball query: 0/1 membership, exact in bf16 --------------------------
    in_rad = (sqrdist <= radius_sq).astype(jnp.bfloat16)           # (tS, tN)

    # local inclusive prefix count within this chunk (MXU matmul against the
    # resident constant triangular matrix; bf16 0/1 operands, f32 acc, exact)
    local = jnp.dot(in_rad, tri_ref[...], preferred_element_type=f32)
    csum = local + carry_ref[...]     # global inclusive prefix count, exact

    # count contributions: #{n in chunk : csum[n] <= k} for each k < K,
    # assembled with one concatenate (K is a small compile-time constant).
    cols = [jnp.sum((csum <= float(k)).astype(f32), axis=1, keepdims=True)
            for k in range(K)]
    cnt_ref[...] = cnt_ref[...] + jnp.concatenate(cols, axis=1)    # (tS, K)
    # csum is non-decreasing along the lane axis: carry = last column.
    carry_ref[...] = csum[:, tN - 1:tN]

    # --- finalize: replace N-padding with first neighbor, single store ------
    @pl.when(n_idx == pl.num_programs(2) - 1)
    def _fin():
        idx = jnp.minimum(cnt_ref[...].astype(jnp.int32), n_valid)  # (tS, K)
        first = idx[:, 0:1]
        out_ref[...] = jnp.where(idx == n_valid, first, idx)


def fixed_radius_near_neighbors(pos, centroids, radius, n_neighbor):
    """pos: (B, N, 3) f32, centroids: (B, S) int → (B, S, n_neighbor) int32."""
    pos = pos.astype(jnp.float32)
    B, N, _ = pos.shape
    S = centroids.shape[1]
    K = int(n_neighbor)
    assert N < (1 << 24), "f32-exact prefix counts require N < 2**24"

    # Cheap gathers / reductions stay in XLA (exact f32, negligible cost).
    cent = centroids.astype(jnp.int32)
    center = jnp.take_along_axis(pos, cent[..., None], axis=1)      # (B, S, 3)
    csq = jnp.sum(center * center, axis=-1, keepdims=True)          # (B, S, 1)

    # --- N (lane) tiling: pad to a multiple of 128, never fall back to tN=N -
    if N <= 256:
        tN, N_pad = N, N
        pos_p = pos
    else:
        N_pad = ((N + 127) // 128) * 128
        tN = 256 if N_pad % 256 == 0 else 128
        # pad points far outside any radius -> never counted as neighbors
        pos_p = jnp.pad(pos, ((0, 0), (0, N_pad - N), (0, 0)),
                        constant_values=1.0e9)

    pos_t = jnp.transpose(pos_p, (0, 2, 1))                         # (B, 3, N_pad)
    psq = jnp.sum(pos_p * pos_p, axis=-1)[:, None, :]               # (B, 1, N_pad)

    # --- S tiling: big tiles to amortize per-step overhead; keep >= 2
    #     parallel grid iterations when B == 1 (v7x has 2 TensorCores).
    cap = 512 if B >= 2 else max(8, S // 2)
    if S <= cap:
        tS = S
    else:
        tS = next((t for t in (512, 256, 128, 64, 32, 16, 8)
                   if t <= cap and S % t == 0), S)

    # constant upper-triangular prefix matrix, hoisted out of the kernel body
    tri = (jnp.arange(tN)[:, None] <= jnp.arange(tN)[None, :]
           ).astype(jnp.bfloat16)                                   # (tN, tN)

    grid = (B, S // tS, N_pad // tN)
    kernel = functools.partial(_frnn_kernel, n_valid=N, K=K, tN=tN,
                               radius_sq=float(radius) ** 2)

    flops = B * S * N_pad * 8 + 2 * B * S * N_pad * tN + 2 * B * S * N_pad * K
    bytes_accessed = (4 * B * (3 * N_pad + N_pad + 4 * S + S * K)
                      + 2 * tN * tN)

    return pl.pallas_call(
        kernel,
        out_shape=jax.ShapeDtypeStruct((B, S, K), jnp.int32),
        grid=grid,
        in_specs=[
            pl.BlockSpec((tN, tN), lambda b, s, n: (0, 0)),          # tri (resident)
            pl.BlockSpec((None, 3, tN), lambda b, s, n: (b, 0, n)),  # pos chunk (lane-dense)
            pl.BlockSpec((None, tS, 3), lambda b, s, n: (b, s, 0)),  # centers
            pl.BlockSpec((None, tS, 1), lambda b, s, n: (b, s, 0)),  # |C|^2
            pl.BlockSpec((None, 1, tN), lambda b, s, n: (b, 0, n)),  # |P|^2 chunk
        ],
        out_specs=pl.BlockSpec((None, tS, K), lambda b, s, n: (b, s, 0)),
        scratch_shapes=[
            pltpu.VMEM((tS, K), jnp.float32),   # running counts
            pltpu.VMEM((tS, 1), jnp.float32),   # running in-radius carry
        ],
        compiler_params=pltpu.CompilerParams(
            dimension_semantics=("parallel", "parallel", "arbitrary"),
            vmem_limit_bytes=32 * 1024 * 1024),
        cost_estimate=pl.CostEstimate(
            flops=flops, transcendentals=0, bytes_accessed=bytes_accessed),
    )(tri, pos_t, center, csq, psq)


def _reference(pos, cent, radius, K):
    """NumPy port of the PyTorch module (for verification)."""
    pos = np.asarray(pos, np.float32)
    cent = np.asarray(cent)
    B, N, _ = pos.shape
    S = cent.shape[1]
    out = np.zeros((B, S, K), np.int32)
    r2 = np.float32(float(radius) ** 2)
    for b in range(B):
        c = pos[b][cent[b]]                                          # (S, 3)
        d = (-2.0 * (c @ pos[b].T)
             + (c ** 2).sum(-1)[:, None]
             + (pos[b] ** 2).sum(-1)[None, :]).astype(np.float32)
        gi = np.tile(np.arange(N), (S, 1))
        gi = np.where(d > r2, N, gi)
        gi = np.sort(gi, axis=-1)[:, :K]
        first = gi[:, 0:1]
        gi = np.where(gi == N, np.broadcast_to(first, gi.shape), gi)
        out[b] = gi.astype(np.int32)
    return out


if __name__ == "__main__":
    B, N, S = 2, 16, 8
    radius, n_neighbor = 0.4, 8

    key = jax.random.PRNGKey(0)
    kp, kc = jax.random.split(key)
    pos = jax.random.uniform(kp, (B, N, 3), dtype=jnp.float32)
    # distinct centroid indices per batch element (like farthest-point indices)
    cent = jnp.stack([
        jax.random.permutation(jax.random.fold_in(kc, b), N)[:S]
        for b in range(B)
    ]).astype(jnp.int32)

    out = fixed_radius_near_neighbors(pos, cent, radius, n_neighbor)
    out = jax.block_until_ready(out)

    assert out.shape == (B, S, n_neighbor)
    assert out.dtype == jnp.int32
    ref = _reference(np.asarray(pos), np.asarray(cent), radius, n_neighbor)
    assert np.array_equal(np.asarray(out), ref), (np.asarray(out), ref)

    print("KERNEL_OK")
</pallas_src>

<mosaic_0001>
module attributes {stable_mosaic.version = 11 : i64} {
  func.func @_frnn_kernel(%arg0: i32, %arg1: i32, %arg2: i32, %arg3: memref<16x16xbf16, #tpu.memory_space<vmem>>, %arg4: memref<1x3x16xf32, #tpu.memory_space<vmem>>, %arg5: memref<1x8x3xf32, #tpu.memory_space<vmem>>, %arg6: memref<1x8x1xf32, #tpu.memory_space<vmem>>, %arg7: memref<1x1x16xf32, #tpu.memory_space<vmem>>, %arg8: memref<1x8x8xi32, #tpu.memory_space<vmem>>, %arg9: memref<8x8xf32, #tpu.memory_space<vmem>>, %arg10: memref<8x1xf32, #tpu.memory_space<vmem>>) attributes {dimension_semantics = [#tpu.dimension_semantics<parallel>, #tpu.dimension_semantics<parallel>, #tpu.dimension_semantics<arbitrary>], iteration_bounds = array<i64: 2, 1, 1>, scalar_prefetch = 0 : i64, scratch_operands = 2 : i64, tpu.core_type = #tpu.core_type<tc>, window_params = [{pipeline_mode = #tpu.pipeline_mode<synchronous>, transform_indices = @transform_0, window_bounds = array<i64: 16, 16>}, {transform_indices = @transform_1, window_bounds = array<i64: 1, 3, 16>}, {transform_indices = @transform_2, window_bounds = array<i64: 1, 8, 3>}, {transform_indices = @transform_3, window_bounds = array<i64: 1, 8, 1>}, {transform_indices = @transform_4, window_bounds = array<i64: 1, 1, 16>}, {transform_indices = @transform_5, window_bounds = array<i64: 1, 8, 8>}]} {
    %c0_i32 = arith.constant 0 : i32
    %0 = arith.cmpi eq, %arg2, %c0_i32 : i32
    %1 = arith.extui %0 : i1 to i32
    %c0_i32_0 = arith.constant 0 : i32
    %2 = arith.cmpi ne, %1, %c0_i32_0 : i32
    scf.if %2 {
      %cst_46 = arith.constant 0.000000e+00 : f32
      %102 = vector.broadcast %cst_46 : f32 to vector<8x8xf32>
      %c0_47 = arith.constant 0 : index
      %c0_48 = arith.constant 0 : index
      %103 = vector.load %arg9[%c0_47, %c0_48] : memref<8x8xf32, #tpu.memory_space<vmem>>, vector<8x8xf32>
      tpu.vector_store %arg9[%c0_47, %c0_48], %102 {strides = array<i32>} : memref<8x8xf32, #tpu.memory_space<vmem>>, vector<8x8xf32>,
      %cst_49 = arith.constant 0.000000e+00 : f32
      %104 = vector.broadcast %cst_49 : f32 to vector<8x1xf32>
      %c0_50 = arith.constant 0 : index
      %c0_51 = arith.constant 0 : index
      %105 = vector.load %arg10[%c0_50, %c0_51] : memref<8x1xf32, #tpu.memory_space<vmem>>, vector<8x1xf32>
      tpu.vector_store %arg10[%c0_50, %c0_51], %104 {strides = array<i32>} : memref<8x1xf32, #tpu.memory_space<vmem>>, vector<8x1xf32>,
    } else {
    }
    %c0 = arith.constant 0 : index
    %c0_1 = arith.constant 0 : index
    %c0_2 = arith.constant 0 : index
    %3 = vector.load %arg5[%c0, %c0_1, %c0_2] : memref<1x8x3xf32, #tpu.memory_space<vmem>>, vector<1x8x3xf32>
    %4 = vector.shape_cast %3 : vector<1x8x3xf32> to vector<8x3xf32>
    %c0_3 = arith.constant 0 : index
    %c0_4 = arith.constant 0 : index
    %c0_5 = arith.constant 0 : index
    %5 = vector.load %arg6[%c0_3, %c0_4, %c0_5] : memref<1x8x1xf32, #tpu.memory_space<vmem>>, vector<1x8x1xf32>
    %6 = vector.shape_cast %5 : vector<1x8x1xf32> to vector<8x1xf32>
    %c0_6 = arith.constant 0 : index
    %c0_7 = arith.constant 0 : index
    %c0_8 = arith.constant 0 : index
    %7 = vector.load %arg7[%c0_6, %c0_7, %c0_8] : memref<1x1x16xf32, #tpu.memory_space<vmem>>, vector<1x1x16xf32>
    %8 = vector.shape_cast %7 : vector<1x1x16xf32> to vector<1x16xf32>
    %9 = vector.extract_strided_slice %4 {offsets = [0, 0], sizes = [8, 1], strides = [1, 1]} : vector<8x3xf32> to vector<8x1xf32>
    %c0_9 = arith.constant 0 : index
    %c0_10 = arith.constant 0 : index
    %c0_11 = arith.constant 0 : index
    %10 = vector.load %arg4[%c0_9, %c0_10, %c0_11] : memref<1x3x16xf32, #tpu.memory_space<vmem>>, vector<1x1x16xf32>
    %11 = vector.shape_cast %10 : vector<1x1x16xf32> to vector<1x16xf32>
    %12 = vector.broadcast %9 : vector<8x1xf32> to vector<8x16xf32>
    %13 = vector.broadcast %11 : vector<1x16xf32> to vector<8x16xf32>
    %14 = arith.mulf %12, %13 : vector<8x16xf32>
    %15 = vector.extract_strided_slice %4 {offsets = [0, 1], sizes = [8, 1], strides = [1, 1]} : vector<8x3xf32> to vector<8x1xf32>
    %c0_12 = arith.constant 0 : index
    %c1 = arith.constant 1 : index
    %c0_13 = arith.constant 0 : index
    %16 = vector.load %arg4[%c0_12, %c1, %c0_13] : memref<1x3x16xf32, #tpu.memory_space<vmem>>, vector<1x1x16xf32>
    %17 = vector.shape_cast %16 : vector<1x1x16xf32> to vector<1x16xf32>
    %18 = vector.broadcast %15 : vector<8x1xf32> to vector<8x16xf32>
    %19 = vector.broadcast %17 : vector<1x16xf32> to vector<8x16xf32>
    %20 = arith.mulf %18, %19 : vector<8x16xf32>
    %21 = arith.addf %14, %20 : vector<8x16xf32>
    %22 = vector.extract_strided_slice %4 {offsets = [0, 2], sizes = [8, 1], strides = [1, 1]} : vector<8x3xf32> to vector<8x1xf32>
    %c0_14 = arith.constant 0 : index
    %c2 = arith.constant 2 : index
    %c0_15 = arith.constant 0 : index
    %23 = vector.load %arg4[%c0_14, %c2, %c0_15] : memref<1x3x16xf32, #tpu.memory_space<vmem>>, vector<1x1x16xf32>
    %24 = vector.shape_cast %23 : vector<1x1x16xf32> to vector<1x16xf32>
    %25 = vector.broadcast %22 : vector<8x1xf32> to vector<8x16xf32>
    %26 = vector.broadcast %24 : vector<1x16xf32> to vector<8x16xf32>
    %27 = arith.mulf %25, %26 : vector<8x16xf32>
    %28 = arith.addf %21, %27 : vector<8x16xf32>
    %cst = arith.constant -2.000000e+00 : f32
    %29 = vector.broadcast %cst : f32 to vector<8x16xf32>
    %30 = arith.mulf %29, %28 : vector<8x16xf32>
    %31 = vector.broadcast %6 : vector<8x1xf32> to vector<8x16xf32>
    %32 = arith.addf %30, %31 : vector<8x16xf32>
    %33 = vector.broadcast %8 : vector<1x16xf32> to vector<8x16xf32>
    %34 = arith.addf %32, %33 : vector<8x16xf32>
    %cst_16 = arith.constant 1.600000e-01 : f32
    %35 = vector.broadcast %cst_16 : f32 to vector<8x16xf32>
    %36 = arith.cmpf ole, %34, %35 : vector<8x16xf32>
    %37 = arith.extui %36 : vector<8x16xi1> to vector<8x16xi32>
    %38 = arith.sitofp %37 : vector<8x16xi32> to vector<8x16xf32>
    %39 = arith.truncf %38 : vector<8x16xf32> to vector<8x16xbf16>
    %c0_17 = arith.constant 0 : index
    %c0_18 = arith.constant 0 : index
    %40 = vector.load %arg3[%c0_17, %c0_18] : memref<16x16xbf16, #tpu.memory_space<vmem>>, vector<16x16xbf16>
    %cst_19 = arith.constant dense<0.000000e+00> : vector<8x16xf32>
    %41 = tpu.matmul %39, %40, %cst_19 {dimension_numbers = #tpu.dot_dimension_numbers<[1], [0], [0], [1], [0, 0, 1, 1], [], []>} : vector<8x16xbf16>, vector<16x16xbf16>, vector<8x16xf32> -> vector<8x16xf32>
    %c0_20 = arith.constant 0 : index
    %c0_21 = arith.constant 0 : index
    %42 = vector.load %arg10[%c0_20, %c0_21] : memref<8x1xf32, #tpu.memory_space<vmem>>, vector<8x1xf32>
    %43 = vector.broadcast %42 : vector<8x1xf32> to vector<8x16xf32>
    %44 = arith.addf %41, %43 : vector<8x16xf32>
    %cst_22 = arith.constant 0.000000e+00 : f32
    %45 = vector.broadcast %cst_22 : f32 to vector<8x16xf32>
    %46 = arith.cmpf ole, %44, %45 : vector<8x16xf32>
    %47 = arith.extui %46 : vector<8x16xi1> to vector<8x16xi32>
    %48 = arith.sitofp %47 : vector<8x16xi32> to vector<8x16xf32>
    %cst_23 = arith.constant dense<0.000000e+00> : vector<8xf32>
    %49 = vector.multi_reduction <add>, %48, %cst_23 [1] : vector<8x16xf32> to vector<8xf32>
    %50 = vector.shape_cast %49 : vector<8xf32> to vector<8x1xf32>
    %cst_24 = arith.constant 1.000000e+00 : f32
    %51 = vector.broadcast %cst_24 : f32 to vector<8x16xf32>
    %52 = arith.cmpf ole, %44, %51 : vector<8x16xf32>
    %53 = arith.extui %52 : vector<8x16xi1> to vector<8x16xi32>
    %54 = arith.sitofp %53 : vector<8x16xi32> to vector<8x16xf32>
    %cst_25 = arith.constant dense<0.000000e+00> : vector<8xf32>
    %55 = vector.multi_reduction <add>, %54, %cst_25 [1] : vector<8x16xf32> to vector<8xf32>
    %56 = vector.shape_cast %55 : vector<8xf32> to vector<8x1xf32>
    %cst_26 = arith.constant 2.000000e+00 : f32
    %57 = vector.broadcast %cst_26 : f32 to vector<8x16xf32>
    %58 = arith.cmpf ole, %44, %57 : vector<8x16xf32>
    %59 = arith.extui %58 : vector<8x16xi1> to vector<8x16xi32>
    %60 = arith.sitofp %59 : vector<8x16xi32> to vector<8x16xf32>
    %cst_27 = arith.constant dense<0.000000e+00> : vector<8xf32>
    %61 = vector.multi_reduction <add>, %60, %cst_27 [1] : vector<8x16xf32> to vector<8xf32>
    %62 = vector.shape_cast %61 : vector<8xf32> to vector<8x1xf32>
    %cst_28 = arith.constant 3.000000e+00 : f32
    %63 = vector.broadcast %cst_28 : f32 to vector<8x16xf32>
    %64 = arith.cmpf ole, %44, %63 : vector<8x16xf32>
    %65 = arith.extui %64 : vector<8x16xi1> to vector<8x16xi32>
    %66 = arith.sitofp %65 : vector<8x16xi32> to vector<8x16xf32>
    %cst_29 = arith.constant dense<0.000000e+00> : vector<8xf32>
    %67 = vector.multi_reduction <add>, %66, %cst_29 [1] : vector<8x16xf32> to vector<8xf32>
    %68 = vector.shape_cast %67 : vector<8xf32> to vector<8x1xf32>
    %cst_30 = arith.constant 4.000000e+00 : f32
    %69 = vector.broadcast %cst_30 : f32 to vector<8x16xf32>
    %70 = arith.cmpf ole, %44, %69 : vector<8x16xf32>
    %71 = arith.extui %70 : vector<8x16xi1> to vector<8x16xi32>
    %72 = arith.sitofp %71 : vector<8x16xi32> to vector<8x16xf32>
    %cst_31 = arith.constant dense<0.000000e+00> : vector<8xf32>
    %73 = vector.multi_reduction <add>, %72, %cst_31 [1] : vector<8x16xf32> to vector<8xf32>
    %74 = vector.shape_cast %73 : vector<8xf32> to vector<8x1xf32>
    %cst_32 = arith.constant 5.000000e+00 : f32
    %75 = vector.broadcast %cst_32 : f32 to vector<8x16xf32>
    %76 = arith.cmpf ole, %44, %75 : vector<8x16xf32>
    %77 = arith.extui %76 : vector<8x16xi1> to vector<8x16xi32>
    %78 = arith.sitofp %77 : vector<8x16xi32> to vector<8x16xf32>
    %cst_33 = arith.constant dense<0.000000e+00> : vector<8xf32>
    %79 = vector.multi_reduction <add>, %78, %cst_33 [1] : vector<8x16xf32> to vector<8xf32>
    %80 = vector.shape_cast %79 : vector<8xf32> to vector<8x1xf32>
    %cst_34 = arith.constant 6.000000e+00 : f32
    %81 = vector.broadcast %cst_34 : f32 to vector<8x16xf32>
    %82 = arith.cmpf ole, %44, %81 : vector<8x16xf32>
    %83 = arith.extui %82 : vector<8x16xi1> to vector<8x16xi32>
    %84 = arith.sitofp %83 : vector<8x16xi32> to vector<8x16xf32>
    %cst_35 = arith.constant dense<0.000000e+00> : vector<8xf32>
    %85 = vector.multi_reduction <add>, %84, %cst_35 [1] : vector<8x16xf32> to vector<8xf32>
    %86 = vector.shape_cast %85 : vector<8xf32> to vector<8x1xf32>
    %cst_36 = arith.constant 7.000000e+00 : f32
    %87 = vector.broadcast %cst_36 : f32 to vector<8x16xf32>
    %88 = arith.cmpf ole, %44, %87 : vector<8x16xf32>
    %89 = arith.extui %88 : vector<8x16xi1> to vector<8x16xi32>
    %90 = arith.sitofp %89 : vector<8x16xi32> to vector<8x16xf32>
    %cst_37 = arith.constant dense<0.000000e+00> : vector<8xf32>
    %91 = vector.multi_reduction <add>, %90, %cst_37 [1] : vector<8x16xf32> to vector<8xf32>
    %92 = vector.shape_cast %91 : vector<8xf32> to vector<8x1xf32>
    %c0_38 = arith.constant 0 : index
    %c0_39 = arith.constant 0 : index
    %93 = vector.load %arg9[%c0_38, %c0_39] : memref<8x8xf32, #tpu.memory_space<vmem>>, vector<8x8xf32>
    %94 = tpu.concatenate %50, %56, %62, %68, %74, %80, %86, %92 in 1 : vector<8x1xf32>, vector<8x1xf32>, vector<8x1xf32>, vector<8x1xf32>, vector<8x1xf32>, vector<8x1xf32>, vector<8x1xf32>, vector<8x1xf32> -> vector<8x8xf32>
    %95 = arith.addf %93, %94 : vector<8x8xf32>
    %c0_40 = arith.constant 0 : index
    %c0_41 = arith.constant 0 : index
    %96 = vector.load %arg9[%c0_40, %c0_41] : memref<8x8xf32, #tpu.memory_space<vmem>>, vector<8x8xf32>
    tpu.vector_store %arg9[%c0_40, %c0_41], %95 {strides = array<i32>} : memref<8x8xf32, #tpu.memory_space<vmem>>, vector<8x8xf32>,
    %97 = vector.extract_strided_slice %44 {offsets = [0, 15], sizes = [8, 1], strides = [1, 1]} : vector<8x16xf32> to vector<8x1xf32>
    %c0_42 = arith.constant 0 : index
    %c0_43 = arith.constant 0 : index
    %98 = vector.load %arg10[%c0_42, %c0_43] : memref<8x1xf32, #tpu.memory_space<vmem>>, vector<8x1xf32>
    tpu.vector_store %arg10[%c0_42, %c0_43], %97 {strides = array<i32>} : memref<8x1xf32, #tpu.memory_space<vmem>>, vector<8x1xf32>,
    %c0_i32_44 = arith.constant 0 : i32
    %99 = arith.cmpi eq, %arg2, %c0_i32_44 : i32
    %100 = arith.extui %99 : i1 to i32
    %c0_i32_45 = arith.constant 0 : i32
    %101 = arith.cmpi ne, %100, %c0_i32_45 : i32
    scf.if %101 {
      %c0_46 = arith.constant 0 : index
      %c0_47 = arith.constant 0 : index
      %102 = vector.load %arg9[%c0_46, %c0_47] : memref<8x8xf32, #tpu.memory_space<vmem>>, vector<8x8xf32>
      %103 = arith.fptosi %102 : vector<8x8xf32> to vector<8x8xi32>
      %c16_i32 = arith.constant 16 : i32
      %104 = vector.broadcast %c16_i32 : i32 to vector<8x8xi32>
      %105 = arith.minsi %103, %104 : vector<8x8xi32>
      %106 = vector.extract_strided_slice %105 {offsets = [0, 0], sizes = [8, 1], strides = [1, 1]} : vector<8x8xi32> to vector<8x1xi32>
      %c16_i32_48 = arith.constant 16 : i32
      %107 = vector.broadcast %c16_i32_48 : i32 to vector<8x8xi32>
      %108 = arith.cmpi eq, %105, %107 : vector<8x8xi32>
      %109 = vector.shape_cast %106 : vector<8x1xi32> to vector<8x1xi32>
      %110 = vector.broadcast %109 : vector<8x1xi32> to vector<8x8xi32>
      %111 = arith.select %108, %110, %105 : vector<8x8xi1>, vector<8x8xi32>
      %c0_49 = arith.constant 0 : index
      %c0_50 = arith.constant 0 : index
      %c0_51 = arith.constant 0 : index
      %112 = vector.load %arg8[%c0_49, %c0_50, %c0_51] : memref<1x8x8xi32, #tpu.memory_space<vmem>>, vector<1x8x8xi32>
      %113 = vector.shape_cast %112 : vector<1x8x8xi32> to vector<8x8xi32>
      %114 = vector.shape_cast %111 : vector<8x8xi32> to vector<1x8x8xi32>
      tpu.vector_store %arg8[%c0_49, %c0_50, %c0_51], %114 {strides = array<i32>} : memref<1x8x8xi32, #tpu.memory_space<vmem>>, vector<1x8x8xi32>,
    } else {
    }
    return
  }
  func.func @transform_0(%arg0: i32, %arg1: i32, %arg2: i32) -> (i32, i32) {
    %c0_i32 = arith.constant 0 : i32
    %c0_i32_0 = arith.constant 0 : i32
    %c0_i32_1 = arith.constant 0 : i32
    return %c0_i32, %c0_i32_0 : i32, i32
  }
  func.func @transform_1(%arg0: i32, %arg1: i32, %arg2: i32) -> (i32, i32, i32) {
    %c0_i32 = arith.constant 0 : i32
    %c0_i32_0 = arith.constant 0 : i32
    return %arg0, %c0_i32, %arg2 : i32, i32, i32
  }
  func.func @transform_2(%arg0: i32, %arg1: i32, %arg2: i32) -> (i32, i32, i32) {
    %c0_i32 = arith.constant 0 : i32
    %c0_i32_0 = arith.constant 0 : i32
    return %arg0, %arg1, %c0_i32 : i32, i32, i32
  }
  func.func @transform_3(%arg0: i32, %arg1: i32, %arg2: i32) -> (i32, i32, i32) {
    %c0_i32 = arith.constant 0 : i32
    %c0_i32_0 = arith.constant 0 : i32
    return %arg0, %arg1, %c0_i32 : i32, i32, i32
  }
  func.func @transform_4(%arg0: i32, %arg1: i32, %arg2: i32) -> (i32, i32, i32) {
    %c0_i32 = arith.constant 0 : i32
    %c0_i32_0 = arith.constant 0 : i32
    return %arg0, %c0_i32, %arg2 : i32, i32, i32
  }
  func.func @transform_5(%arg0: i32, %arg1: i32, %arg2: i32) -> (i32, i32, i32) {
    %c0_i32 = arith.constant 0 : i32
    %c0_i32_0 = arith.constant 0 : i32
    return %arg0, %arg1, %c0_i32 : i32, i32, i32
  }
}

</mosaic_0001>

<llo_original>
// kernel: tpu_custom_call.1
$region0: #{tpu_custom_call.1}
  #allocation0 [shape = 'u32[]', space=smem, size = 0x4, offset = 0x4, fixed_abs, tag = 'smem constant byte address 0x4 - core index']
  #allocation1 [shape = 'u32[144,128]{1,0:T(1,128)}', space=vmem, size = 0x12000, scoped, tag = 'internal scratch']
  #allocation2 [shape = 'f32[8,8]{1,0:T(8,128)}', space=vmem, size = 0x1000, scoped, tag = 'scratch operand']
  #allocation3 [shape = 'f32[8,1]{1,0:T(8,128)}', space=vmem, size = 0x1000, scoped, tag = 'scratch operand']
  %s0 = inlined_call_operand.vmem [shape: bf16[16,16], index: 0, kind: input, shape index: {}]
  %s1 = inlined_call_operand.vmem [shape: f32[2,3,16], index: 1, kind: input, shape index: {}]
  %s2 = inlined_call_operand.vmem [shape: f32[2,8,3], index: 2, kind: input, shape index: {}]
  %s3 = inlined_call_operand.vmem [shape: f32[2,8,1], index: 3, kind: input, shape index: {}]
  %s4 = inlined_call_operand.vmem [shape: f32[2,1,16], index: 4, kind: input, shape index: {}]
  %s5 = inlined_call_operand.hbm [shape: s32[2,8,8], index: 5, kind: output, shape index: {}]
  %s6 = sld [smem:[#allocation0]]
  $region61: #{tpu_custom_call.1} parent=0
    _
  %s8 = ssub.s32 1, %s6
  %s9 = scalar_select 0, %s8, %s6
  $region1: #{tpu_custom_call.1} parent=0
    #allocation4 [shape = 'u8[8192]{0}', space=vmem, size = 0x2000, scoped, tag = 'output window, operand 0']
    #allocation5 [shape = 's32[2]{0}', space=sflag, size = 0x8, scoped, tag = 'scoped memory for tpu_custom_call.1']
    %10 = vsyncpa [#allocation5], 0
    %s11 = scalar_lea.sflag [#allocation5], 1
    %12 = vsyncpa %s11, 0
    loop: start=0, step=1, limit=4
    $region2: #{tpu_custom_call.1} parent=1 // loop_pre_header
      _
    $region3: #{tpu_custom_call.1} parent=1 // loop_header
      %s14 = sphi 0, %s18
      %p15 = scmp.ge.s32.totalorder %s14, 4
      %s21 = sphi 0, %s40
      %s22 = sphi 0, %s36
      %s23 = sphi 0, %s32
      %s24 = sphi 0, %s21
      %s25 = sphi 0, %s22
      %s26 = sphi 0, %s23
      %s27 = sphi 0, %s24
      %s28 = sphi 0, %s25
      %s29 = sphi 0, %s26
      %s41 = sphi 0, %s41
      %s43 = sphi 0, %s41
      %s44 = sphi 0, %s43
      %s58 = sphi 0, %s44
      %s66 = sphi 0, %s68
      %s69 = sphi 0, %s66
      %s70 = sphi 0, %s69
      %s86 = sphi 0, %s70
      %s94 = sphi 0, %s96
      %s97 = sphi 0, %s94
      %s98 = sphi 0, %s97
      %s114 = sphi 0, %s98
      %s122 = sphi 0, %s124
      %s125 = sphi 0, %s122
      %s126 = sphi 0, %s125
      %s142 = sphi 0, %s126
      %s150 = sphi 0, %s152
      %s153 = sphi 0, %s150
      %s154 = sphi 0, %s153
      %s170 = sphi 0, %s154
      %s178 = sphi 0, %s180
      %s181 = sphi 0, %s178
      %s182 = sphi 0, %s181
      %s198 = sphi 0, %s182
    $region4: #{tpu_custom_call.1} parent=1 // loop_header_branch
      %17 = sbr.rel (%p15) target = $region8
    $region5: #{tpu_custom_call.1} parent=1 // loop_body
      %s19 = ssub.s32 %s14, 1
      %s20 = ssub.s32 %s14, 2
      %s30 = sadd.s32 1, %s23
      %p31 = scmp.ge.s32.totalorder %s30, 1
      %s32 = scalar_select %p31, 0, %s30
      %s33 = sadd.s32 1, %s22
      %s34 = scalar_select %p31, %s33, %s22
      %p35 = scmp.ge.s32.totalorder %s34, 1
      %s36 = scalar_select %p35, 0, %s34
      %s37 = sadd.s32 1, %s21
      %s38 = scalar_select %p35, %s37, %s21
      %p39 = scmp.ge.s32.totalorder %s38, 2
      %s40 = scalar_select %p39, 0, %s38
      %s42 = sadd.s32 %s41, 1
      %p45 = scmp.eq.s32.totalorder %s14, 1
      %p46 = scmp.ne.s32.totalorder %s41, %s43
      %p47 = scmp.eq.s32.totalorder %s14, 0
      %p48 = por %p46, %p47
      %p49 = scmp.ne.s32.totalorder %s41, %s43
      %p50 = scmp.eq.s32.totalorder %s19, 1
      %p51 = por %p49, %p50
      %p52 = scmp.ne.s32.totalorder %s43, %s44
      %p53 = scmp.eq.s32.totalorder %s19, 0
      %p54 = por %p52, %p53
      %p55 = scmp.ne.s32.totalorder %s43, %s44
      %p56 = scmp.eq.s32.totalorder %s20, 1
      %p57 = por %p55, %p56
      %p59 = scmp.ne.s32.totalorder %s44, %s58
      %p60 = scmp.eq.s32.totalorder %s20, 0
      %p61 = por %p59, %p60
      %s62 = ssub.s32 %s21, %s40
      %s63 = ssub.s32 %s23, %s32
      %s64 = sor.u32 %s62, %s63
      %p65 = scmp.eq.s32.totalorder %s64, 0
      %s67 = sadd.s32 %s66, 1
      %s68 = scalar_select %p65, %s66, %s67
      %p71 = pneg %p65
      %p72 = scmp.eq.s32.totalorder %s14, 1
      %p73 = por %p71, %p72
      %p74 = scmp.ne.s32.totalorder %s66, %s69
      %p75 = scmp.eq.s32.totalorder %s14, 0
      %p76 = por %p74, %p75
      %p77 = scmp.ne.s32.totalorder %s66, %s69
      %p78 = scmp.eq.s32.totalorder %s19, 1
      %p79 = por %p77, %p78
      %p80 = scmp.ne.s32.totalorder %s69, %s70
      %p81 = scmp.eq.s32.totalorder %s19, 0
      %p82 = por %p80, %p81
      %p83 = scmp.ne.s32.totalorder %s69, %s70
      %p84 = scmp.eq.s32.totalorder %s20, 1
      %p85 = por %p83, %p84
      %p87 = scmp.ne.s32.totalorder %s70, %s86
      %p88 = scmp.eq.s32.totalorder %s20, 0
      %p89 = por %p87, %p88
      %s90 = ssub.s32 %s21, %s40
      %s91 = ssub.s32 %s22, %s36
      %s92 = sor.u32 %s90, %s91
      %p93 = scmp.eq.s32.totalorder %s92, 0
      %s95 = sadd.s32 %s94, 1
      %s96 = scalar_select %p93, %s94, %s95
      %p99 = pneg %p93
      %p100 = scmp.eq.s32.totalorder %s14, 1
      %p101 = por %p99, %p100
      %p102 = scmp.ne.s32.totalorder %s94, %s97
      %p103 = scmp.eq.s32.totalorder %s14, 0
      %p104 = por %p102, %p103
      %p105 = scmp.ne.s32.totalorder %s94, %s97
      %p106 = scmp.eq.s32.totalorder %s19, 1
      %p107 = por %p105, %p106
      %p108 = scmp.ne.s32.totalorder %s97, %s98
      %p109 = scmp.eq.s32.totalorder %s19, 0
      %p110 = por %p108, %p109
      %p111 = scmp.ne.s32.totalorder %s97, %s98
      %p112 = scmp.eq.s32.totalorder %s20, 1
      %p113 = por %p111, %p112
      %p115 = scmp.ne.s32.totalorder %s98, %s114
      %p116 = scmp.eq.s32.totalorder %s20, 0
      %p117 = por %p115, %p116
      %s118 = ssub.s32 %s21, %s40
      %s119 = ssub.s32 %s22, %s36
      %s120 = sor.u32 %s118, %s119
      %p121 = scmp.eq.s32.totalorder %s120, 0
      %s123 = sadd.s32 %s122, 1
      %s124 = scalar_select %p121, %s122, %s123
      %p127 = pneg %p121
      %p128 = scmp.eq.s32.totalorder %s14, 1
      %p129 = por %p127, %p128
      %p130 = scmp.ne.s32.totalorder %s122, %s125
      %p131 = scmp.eq.s32.totalorder %s14, 0
      %p132 = por %p130, %p131
      %p133 = scmp.ne.s32.totalorder %s122, %s125
      %p134 = scmp.eq.s32.totalorder %s19, 1
      %p135 = por %p133, %p134
      %p136 = scmp.ne.s32.totalorder %s125, %s126
      %p137 = scmp.eq.s32.totalorder %s19, 0
      %p138 = por %p136, %p137
      %p139 = scmp.ne.s32.totalorder %s125, %s126
      %p140 = scmp.eq.s32.totalorder %s20, 1
      %p141 = por %p139, %p140
      %p143 = scmp.ne.s32.totalorder %s126, %s142
      %p144 = scmp.eq.s32.totalorder %s20, 0
      %p145 = por %p143, %p144
      %s146 = ssub.s32 %s21, %s40
      %s147 = ssub.s32 %s23, %s32
      %s148 = sor.u32 %s146, %s147
      %p149 = scmp.eq.s32.totalorder %s148, 0
      %s151 = sadd.s32 %s150, 1
      %s152 = scalar_select %p149, %s150, %s151
      %p155 = pneg %p149
      %p156 = scmp.eq.s32.totalorder %s14, 1
      %p157 = por %p155, %p156
      %p158 = scmp.ne.s32.totalorder %s150, %s153
      %p159 = scmp.eq.s32.totalorder %s14, 0
      %p160 = por %p158, %p159
      %p161 = scmp.ne.s32.totalorder %s150, %s153
      %p162 = scmp.eq.s32.totalorder %s19, 1
      %p163 = por %p161, %p162
      %p164 = scmp.ne.s32.totalorder %s153, %s154
      %p165 = scmp.eq.s32.totalorder %s19, 0
      %p166 = por %p164, %p165
      %p167 = scmp.ne.s32.totalorder %s153, %s154
      %p168 = scmp.eq.s32.totalorder %s20, 1
      %p169 = por %p167, %p168
      %p171 = scmp.ne.s32.totalorder %s154, %s170
      %p172 = scmp.eq.s32.totalorder %s20, 0
      %p173 = por %p171, %p172
      %s174 = ssub.s32 %s21, %s40
      %s175 = ssub.s32 %s22, %s36
      %s176 = sor.u32 %s174, %s175
      %p177 = scmp.eq.s32.totalorder %s176, 0
      %s179 = sadd.s32 %s178, 1
      %s180 = scalar_select %p177, %s178, %s179
      %p183 = pneg %p177
      %p184 = scmp.eq.s32.totalorder %s14, 1
      %p185 = por %p183, %p184
      %p186 = scmp.ne.s32.totalorder %s178, %s181
      %p187 = scmp.eq.s32.totalorder %s14, 0
      %p188 = por %p186, %p187
      %p189 = scmp.ne.s32.totalorder %s178, %s181
      %p190 = scmp.eq.s32.totalorder %s19, 1
      %p191 = por %p189, %p190
      %p192 = scmp.ne.s32.totalorder %s181, %s182
      %p193 = scmp.eq.s32.totalorder %s19, 0
      %p194 = por %p192, %p193
      %p195 = scmp.ne.s32.totalorder %s181, %s182
      %p196 = scmp.eq.s32.totalorder %s20, 1
      %p197 = por %p195, %p196
      %p199 = scmp.ne.s32.totalorder %s182, %s198
      %p200 = scmp.eq.s32.totalorder %s20, 0
      %p201 = por %p199, %p200
      %p202 = scmp.le.s32.totalorder 1, %s14
      %p203 = scmp.lt.s32.totalorder %s14, 3
      %p204 = pnand %p202, %p203
      %p205 = pneg %p204
      // Predicated region
      $region9: #{tpu_custom_call.1} parent=5 // pred_check
        _
      $region10: #{tpu_custom_call.1} parent=5 // pred_check_branch
        %207 = sbr.rel (%p204) target = $region12
      $region11: #{tpu_custom_call.1} parent=5 // pred_region
        %s208 = ssub.s32 %s14, 1
        // Predicated region
        $region13: #{tpu_custom_call.1} parent=11 // pred_check
          %p209 = pneg %p54
        $region14: #{tpu_custom_call.1} parent=11 // pred_check_branch
          %211 = sbr.rel (%p209) target = $region16
        $region15: #{tpu_custom_call.1} parent=11 // pred_region
          _
        $region16: #{tpu_custom_call.1} parent=11 // pred_fallthru
          _
      $region12: #{tpu_custom_call.1} parent=5 // pred_fallthru
        _
      %p212 = scmp.lt.s32.totalorder %s14, 2
      // Predicated region
      $region17: #{tpu_custom_call.1} parent=5 // pred_check
        %p213 = pneg %p212
      $region18: #{tpu_custom_call.1} parent=5 // pred_check_branch
        %215 = sbr.rel (%p213) target = $region20
      $region19: #{tpu_custom_call.1} parent=5 // pred_region
        // Predicated region
        $region21: #{tpu_custom_call.1} parent=19 // pred_check
          %p216 = pneg %p76
        $region22: #{tpu_custom_call.1} parent=19 // pred_check_branch
          %218 = sbr.rel (%p216) target = $region24
        $region23: #{tpu_custom_call.1} parent=19 // pred_region
          %p219 = scmp.lt.s32.totalorder %s21, 1
          %s220 = scalar_select %p219, %s21, 1
          %p221 = scmp.lt.s32.totalorder %s23, 0
          %s222 = scalar_select %p221, %s23, 0
          %s223 = sadd.s32 %s222, %s220
          %s224 = smul.addr %s223, 4
          %s225 = scalar_lea.vmem %s1, %s224
        $region24: #{tpu_custom_call.1} parent=19 // pred_fallthru
          _
        // Predicated region
        $region25: #{tpu_custom_call.1} parent=19 // pred_check
          %p226 = pneg %p104
        $region26: #{tpu_custom_call.1} parent=19 // pred_check_branch
          %228 = sbr.rel (%p226) target = $region28
        $region27: #{tpu_custom_call.1} parent=19 // pred_region
          %p229 = scmp.lt.s32.totalorder %s21, 1
          %s230 = scalar_select %p229, %s21, 1
          %p231 = scmp.lt.s32.totalorder %s22, 0
          %s232 = scalar_select %p231, %s22, 0
          %s233 = sadd.s32 %s232, %s230
          %s234 = smul.addr %s233, 8
          %s235 = scalar_lea.vmem %s2, %s234
        $region28: #{tpu_custom_call.1} parent=19 // pred_fallthru
          _
        // Predicated region
        $region29: #{tpu_custom_call.1} parent=19 // pred_check
          %p236 = pneg %p132
        $region30: #{tpu_custom_call.1} parent=19 // pred_check_branch
          %238 = sbr.rel (%p236) target = $region32
        $region31: #{tpu_custom_call.1} parent=19 // pred_region
          %p239 = scmp.lt.s32.totalorder %s21, 1
          %s240 = scalar_select %p239, %s21, 1
          %p241 = scmp.lt.s32.totalorder %s22, 0
          %s242 = scalar_select %p241, %s22, 0
          %s243 = sadd.s32 %s242, %s240
          %s244 = smul.addr %s243, 8
          %s245 = scalar_lea.vmem %s3, %s244
        $region32: #{tpu_custom_call.1} parent=19 // pred_fallthru
          _
        // Predicated region
        $region33: #{tpu_custom_call.1} parent=19 // pred_check
          %p246 = pneg %p160
        $region34: #{tpu_custom_call.1} parent=19 // pred_check_branch
          %248 = sbr.rel (%p246) target = $region36
        $region35: #{tpu_custom_call.1} parent=19 // pred_region
          %p249 = scmp.lt.s32.totalorder %s21, 1
          %s250 = scalar_select %p249, %s21, 1
          %p251 = scmp.lt.s32.totalorder %s23, 0
          %s252 = scalar_select %p251, %s23, 0
          %s253 = sadd.s32 %s252, %s250
          %s254 = scalar_lea.vmem %s4, %s253
        $region36: #{tpu_custom_call.1} parent=19 // pred_fallthru
          _
      $region20: #{tpu_custom_call.1} parent=5 // pred_fallthru
        _
      %p255 = scmp.le.s32.totalorder 1, %s14
      %p256 = scmp.lt.s32.totalorder %s14, 3
      %p257 = pnand %p255, %p256
      %p258 = pneg %p257
      // Predicated region
      $region37: #{tpu_custom_call.1} parent=5 // pred_check
        _
      $region38: #{tpu_custom_call.1} parent=5 // pred_check_branch
        %260 = sbr.rel (%p257) target = $region40
      $region39: #{tpu_custom_call.1} parent=5 // pred_region
        %s261 = ssub.s32 %s14, 1
        %p262 = pneg %p54
        %p263 = pneg %p51
        %p264 = scmp.lt.s32.totalorder %s24, 1
        %s265 = scalar_select %p264, %s24, 1
        %p266 = scmp.lt.s32.totalorder %s26, 0
        %s267 = scalar_select %p266, %s26, 0
        %s268 = sadd.s32 %s267, %s265
        %s269 = smul.addr %s268, 4
        %s270 = scalar_lea.vmem %s1, %s269
        %p271 = pneg %p82
        %p272 = pneg %p79
        %p273 = scmp.lt.s32.totalorder %s24, 1
        %s274 = scalar_select %p273, %s24, 1
        %p275 = scmp.lt.s32.totalorder %s25, 0
        %s276 = scalar_select %p275, %s25, 0
        %s277 = sadd.s32 %s276, %s274
        %s278 = smul.addr %s277, 8
        %s279 = scalar_lea.vmem %s2, %s278
        %p280 = pneg %p110
        %p281 = pneg %p107
        %p282 = scmp.lt.s32.totalorder %s24, 1
        %s283 = scalar_select %p282, %s24, 1
        %p284 = scmp.lt.s32.totalorder %s25, 0
        %s285 = scalar_select %p284, %s25, 0
        %s286 = sadd.s32 %s285, %s283
        %s287 = smul.addr %s286, 8
        %s288 = scalar_lea.vmem %s3, %s287
        %p289 = pneg %p138
        %p290 = pneg %p135
        %p291 = scmp.lt.s32.totalorder %s24, 1
        %s292 = scalar_select %p291, %s24, 1
        %p293 = scmp.lt.s32.totalorder %s26, 0
        %s294 = scalar_select %p293, %s26, 0
        %s295 = sadd.s32 %s294, %s292
        %s296 = scalar_lea.vmem %s4, %s295
        %p297 = pneg %p166
        %p298 = pneg %p163
        %p299 = pneg %p194
        %p300 = pneg %p191
        %s301 = sand.u32 %s181, 1
        %s302 = scalar_lea.sflag [#allocation5], %s301
        %s303 = sand.u32 %s181, 1
        %s304 = smul.addr %s303, 8
        %s305 = scalar_lea.vmem [#allocation4], %s304
        %p306 = scmp.lt.s32.totalorder %s24, 1
        %s307 = scalar_select %p306, %s24, 1
        %p308 = scmp.lt.s32.totalorder %s26, 0
        %s309 = scalar_select %p308, %s26, 0
        %s310 = sadd.s32 %s309, %s307
        %s311 = smul.addr %s310, 4
        %s312 = scalar_lea.vmem %s1, %s311
        %p313 = scmp.lt.s32.totalorder %s24, 1
        %s314 = scalar_select %p313, %s24, 1
        %p315 = scmp.lt.s32.totalorder %s25, 0
        %s316 = scalar_select %p315, %s25, 0
        %s317 = sadd.s32 %s316, %s314
        %s318 = smul.addr %s317, 8
        %s319 = scalar_lea.vmem %s2, %s318
        %p320 = scmp.lt.s32.totalorder %s24, 1
        %s321 = scalar_select %p320, %s24, 1
        %p322 = scmp.lt.s32.totalorder %s25, 0
        %s323 = scalar_select %p322, %s25, 0
        %s324 = sadd.s32 %s323, %s321
        %s325 = smul.addr %s324, 8
        %s326 = scalar_lea.vmem %s3, %s325
        %p327 = scmp.lt.s32.totalorder %s24, 1
        %s328 = scalar_select %p327, %s24, 1
        %p329 = scmp.lt.s32.totalorder %s26, 0
        %s330 = scalar_select %p329, %s26, 0
        %s331 = sadd.s32 %s330, %s328
        %s332 = scalar_lea.vmem %s4, %s331
        %p334 = scmp.eq.s32.totalorder %s26, 0
        // Predicated region
        $region41: #{tpu_custom_call.1} parent=39 // pred_check
          %p335 = pneg %p334
        $region42: #{tpu_custom_call.1} parent=39 // pred_check_branch
          %337 = sbr.rel (%p335) target = $region44
        $region43: #{tpu_custom_call.1} parent=39 // pred_region
          %vm338 = vcmask 64512
          %339 = vst.msk [vmem:[#allocation2] sm:$0xff] %vm338, 0.0
          %vm340 = vcmask 7168
          %341 = vst.msk [vmem:[#allocation3] sm:$0xff] %vm340, 0.0
        $region44: #{tpu_custom_call.1} parent=39 // pred_fallthru
          _
        %v342 = vld [vmem:[%s319] sm:$0xff]
        %v343 = vld [vmem:[%s326] sm:$0xff]
        %v344 = vld [vmem:[%s332] sm:$0x1]
        %v345 = vld [vmem:[%s312] sm:$0x1]
        %347 = vset.pattern.permute.xlu0 0
        %348 = vperm.xlu0 %347, %v342
        %v349 = vpop.permute.xlu0 %348
        %v351 = vlaneseq
        %v352 = vshrl.u32 %v351, 7
        %v353 = vsub.s32 0, %v352
        %v354 = vrot.slane %v345, %v353
        %v355 = vmul.f32 %v349, %v354
        %v356 = vld [vmem:[%s312 + $0x1] sm:$0x1]
        %357 = vset.pattern.permute.xlu0 1
        %358 = vperm.xlu0 %357, %v342
        %v359 = vpop.permute.xlu0 %358
        %v361 = vlaneseq
        %v362 = vshrl.u32 %v361, 7
        %v363 = vsub.s32 0, %v362
        %v364 = vrot.slane %v356, %v363
        %v365 = vmul.f32 %v359, %v364
        %v366 = vadd.f32 %v355, %v365
        %v367 = vld [vmem:[%s312 + $0x2] sm:$0x1]
        %368 = vset.pattern.permute.xlu0 2
        %369 = vperm.xlu0 %368, %v342
        %v370 = vpop.permute.xlu0 %369
        %v372 = vlaneseq
        %v373 = vshrl.u32 %v372, 7
        %v374 = vsub.s32 0, %v373
        %v375 = vrot.slane %v367, %v374
        %v376 = vmul.f32 %v370, %v375
        %v377 = vadd.f32 %v366, %v376
        %v378 = vmul.f32 %v377, -2.0
        %380 = vset.pattern.permute.xlu0 0
        %381 = vperm.xlu0 %380, %v343
        %v382 = vpop.permute.xlu0 %381
        %v384 = vadd.f32 %v378, %v382
        %v386 = vlaneseq
        %v387 = vshrl.u32 %v386, 7
        %v388 = vsub.s32 0, %v387
        %v389 = vrot.slane %v344, %v388
        %v391 = vadd.f32 %v384, %v389
        %vm392 = vcmp.le.f32.partialorder %v391, 0.16
        %v393 = vsel %vm392, 1, 0
        %v394 = vcvt.s32.f32 %v393
        %v395 = vpack.c.bf16 %v394, %v394
        %v396 = vld [vmem:[%s0] sm:$0xf]
        %v397 = vld [vmem:[%s0 + $0x4] sm:$0xf]
        %v398 = vld [vmem:[#allocation3] sm:$0xff]
        %400 = vset.pattern.permute.xlu0 0
        %401 = vperm.xlu0 %400, %v398
        %v402 = vpop.permute.xlu0 %401
        %v406 = vunpack.c.l.b16 %v396
        %v407 = vunpack.c.l.b16 %v397
        %v408 = vpack.c.b16 %v407, %v406
        %vm410 = vcmask 130048
        %v412 = vsel %vm410, %v395, 0
        %414 = vmatprep.subr.bf16.mxu0 0
        %415 = vmatpush1.bf16.msra.mxu0 %v408
        %416 = vmatprep.subr.bf16.mxu0 0
        %417 = vmatpush1.bf16.msra.mxu0 0
        %418 = vmatprep.subr.bf16.mxu0 0
        %419 = vmatpush1.bf16.msra.mxu0 0
        %420 = vmatprep.subr.bf16.mxu0 0
        %421 = vmatpush1.bf16.msra.mxu0 0
        %422 = vmatprep.subr.bf16.mxu0 0
        %423 = vmatpush1.bf16.msra.mxu0 0
        %424 = vmatprep.subr.bf16.mxu0 0
        %425 = vmatpush1.bf16.msra.mxu0 0
        %426 = vmatprep.subr.bf16.mxu0 0
        %427 = vmatpush1.bf16.msra.mxu0 0
        %428 = vmatprep.subr.bf16.mxu0 0
        %429 = vmatpush1.bf16.msra.mxu0 0
        %430 = vmatprep.subr.bf16.mxu0 0
        %431 = vmatpush1.bf16.msra.mxu0 0
        %432 = vmatprep.subr.bf16.mxu0 0
        %433 = vmatpush1.bf16.msra.mxu0 0
        %434 = vmatprep.subr.bf16.mxu0 0
        %435 = vmatpush1.bf16.msra.mxu0 0
        %436 = vmatprep.subr.bf16.mxu0 0
        %437 = vmatpush1.bf16.msra.mxu0 0
        %438 = vmatprep.subr.bf16.mxu0 0
        %439 = vmatpush1.bf16.msra.mxu0 0
        %440 = vmatprep.subr.bf16.mxu0 0
        %441 = vmatpush1.bf16.msra.mxu0 0
        %442 = vmatprep.subr.bf16.mxu0 0
        %443 = vmatpush1.bf16.msra.mxu0 0
        %444 = vmatprep.subr.bf16.mxu0 0
        %445 = vmatpush1.bf16.msra.mxu0 0
        %446 = vmatprep.mubr.bf16.mxu0 0
        %447 = vmatmul.mubr.bf16.gmra.mrb[0].mxu0 %v412
        %v448 = vpop.f32.mrb[0].mxu0
        %v449 = vadd.f32 %v402, %v448
        %v450 = vpop.f32.mrb[0].mxu0
        %v451 = vpop.f32.mrb[0].mxu0
        %v452 = vpop.f32.mrb[0].mxu0
        %453 = vdwg.mxu0
        %vm454 = vcmp.le.f32.partialorder %v449, 0.0
        %v455 = vsel %vm454, 1, 0
        %v456 = vcvt.s32.f32 %v455
        %v457 = vsel %vm410, %v456, 0.0
        %458 = vadd.xlane.f32.xlu0 %v457
        %v459 = vpop.xlane.xlu0 %458
        %vm460 = vcmp.le.f32.partialorder %v449, 1.0
        %v461 = vsel %vm460, 1, 0
        %v462 = vcvt.s32.f32 %v461
        %v463 = vsel %vm410, %v462, 0.0
        %464 = vadd.xlane.f32.xlu0 %v463
        %v465 = vpop.xlane.xlu0 %464
        %vm466 = vcmp.le.f32.partialorder %v449, 2.0
        %v467 = vsel %vm466, 1, 0
        %v468 = vcvt.s32.f32 %v467
        %v469 = vsel %vm410, %v468, 0.0
        %470 = vadd.xlane.f32.xlu0 %v469
        %v471 = vpop.xlane.xlu0 %470
        %vm472 = vcmp.le.f32.partialorder %v449, 3.0
        %v473 = vsel %vm472, 1, 0
        %v474 = vcvt.s32.f32 %v473
        %v475 = vsel %vm410, %v474, 0.0
        %476 = vadd.xlane.f32.xlu0 %v475
        %v477 = vpop.xlane.xlu0 %476
        %vm478 = vcmp.le.f32.partialorder %v449, 4.0
        %v479 = vsel %vm478, 1, 0
        %v480 = vcvt.s32.f32 %v479
        %v481 = vsel %vm410, %v480, 0.0
        %482 = vadd.xlane.f32.xlu0 %v481
        %v483 = vpop.xlane.xlu0 %482
        %vm484 = vcmp.le.f32.partialorder %v449, 5.0
        %v485 = vsel %vm484, 1, 0
        %v486 = vcvt.s32.f32 %v485
        %v487 = vsel %vm410, %v486, 0.0
        %488 = vadd.xlane.f32.xlu0 %v487
        %v489 = vpop.xlane.xlu0 %488
        %vm490 = vcmp.le.f32.partialorder %v449, 6.0
        %v491 = vsel %vm490, 1, 0
        %v492 = vcvt.s32.f32 %v491
        %v493 = vsel %vm410, %v492, 0.0
        %494 = vadd.xlane.f32.xlu0 %v493
        %v495 = vpop.xlane.xlu0 %494
        %vm496 = vcmp.le.f32.partialorder %v449, 7.0
        %v497 = vsel %vm496, 1, 0
        %v498 = vcvt.s32.f32 %v497
        %v499 = vsel %vm410, %v498, 0.0
        %500 = vadd.xlane.f32.xlu0 %v499
        %v501 = vpop.xlane.xlu0 %500
        %v502 = vld [vmem:[#allocation2] sm:$0xff]
        %vm503 = vcmask 7168
        %v504 = vsel %vm503, %v459, %v465
        %vm505 = vcmask 15360
        %v506 = vsel %vm505, %v504, %v471
        %vm507 = vcmask 23552
        %v508 = vsel %vm507, %v506, %v477
        %vm509 = vcmask 31744
        %v510 = vsel %vm509, %v508, %v483
        %vm511 = vcmask 39936
        %v512 = vsel %vm511, %v510, %v489
        %vm513 = vcmask 48128
        %v514 = vsel %vm513, %v512, %v495
        %vm515 = vcmask 56320
        %v516 = vsel %vm515, %v514, %v501
        %v517 = vadd.f32 %v502, %v516
        %vm518 = vcmask 64512
        %519 = vst.msk [vmem:[#allocation2] sm:$0xff] %vm518, %v517
        %521 = vrot.lane.b32.xlu0 %v449, 113
        %v522 = vpop.permute.xlu0 %521
        %524 = vst.msk [vmem:[#allocation3] sm:$0xff] %vm503, %v522
        // Predicated region
        $region45: #{tpu_custom_call.1} parent=39 // pred_check
          %p525 = pneg %p334
        $region46: #{tpu_custom_call.1} parent=39 // pred_check_branch
          %527 = sbr.rel (%p525) target = $region48
        $region47: #{tpu_custom_call.1} parent=39 // pred_region
          %v528 = vld [vmem:[#allocation2] sm:$0xff]
          %v529 = vcvt.f32.s32.to.zero.pseudo %v528
          %vm530 = vcmp.lt.s32.totalorder %v529, 16
          %v531 = vsel %vm530, %v529, 16
          %vm532 = vcmp.eq.s32.totalorder %v531, 16
          %533 = vset.pattern.permute.xlu0 0
          %534 = vperm.xlu0 %533, %v531
          %v535 = vpop.permute.xlu0 %534
          %v536 = vsel %vm532, %v535, %v531
          %537 = vst.msk [vmem:[%s305] sm:$0xff] %vm518, %v536
        $region48: #{tpu_custom_call.1} parent=39 // pred_fallthru
          _
        %s538 = sand.u32 %s181, 1
        %s539 = scalar_lea.sflag [#allocation5], %s538
        %s540 = sand.u32 %s181, 1
        %s541 = smul.addr %s540, 8
        %s542 = scalar_lea.vmem [#allocation4], %s541
        // Predicated region
        $region49: #{tpu_custom_call.1} parent=39 // pred_check
          %p543 = pneg %p191
        $region50: #{tpu_custom_call.1} parent=39 // pred_check_branch
          %545 = sbr.rel (%p543) target = $region52
        $region51: #{tpu_custom_call.1} parent=39 // pred_region
          %s547 = ssub.s32 128, 128
          %548 = vsyncadd %s539, %s547
          %s549 = sadd.s32 %s25, %s24
          %s550 = smul.addr %s549, 128
          %s551 = scalar_lea.hbm %s5, %s550
          %s553 = sshll.u32 %s542, 4
          %s554 = int_to_ptr.vmem [resolvable:$true] %s553
          %556 = dma.vmem_to_hbm [thread:$0]  %s554, 128, %s551, %s539
        $region52: #{tpu_custom_call.1} parent=39 // pred_fallthru
          _
      $region40: #{tpu_custom_call.1} parent=5 // pred_fallthru
        _
      %p557 = scmp.le.s32.totalorder 2, %s14
      // Predicated region
      $region53: #{tpu_custom_call.1} parent=5 // pred_check
        %p558 = pneg %p557
      $region54: #{tpu_custom_call.1} parent=5 // pred_check_branch
        %560 = sbr.rel (%p558) target = $region56
      $region55: #{tpu_custom_call.1} parent=5 // pred_region
        %s561 = ssub.s32 %s14, 2
        // Predicated region
        $region57: #{tpu_custom_call.1} parent=55 // pred_check
          %p562 = pneg %p197
        $region58: #{tpu_custom_call.1} parent=55 // pred_check_branch
          %564 = sbr.rel (%p562) target = $region60
        $region59: #{tpu_custom_call.1} parent=55 // pred_region
          %s565 = sand.u32 %s182, 1
          %s566 = scalar_lea.sflag [#allocation5], %s565
          %s567 = sand.u32 %s182, 1
          %s568 = smul.addr %s567, 8
          %s569 = scalar_lea.vmem [#allocation4], %s568
          %570 = dma.done %s566, 128
        $region60: #{tpu_custom_call.1} parent=55 // pred_fallthru
          _
      $region56: #{tpu_custom_call.1} parent=5 // pred_fallthru
        _
    $region6: #{tpu_custom_call.1} parent=1 // loop_footer
      %s18 = sadd.s32 1, %s14
    $region7: #{tpu_custom_call.1} parent=1 // loop_footer_branch
      %13 = sbr.rel target = $region3
    $region8: #{tpu_custom_call.1} parent=1 // loop_exit
      _
    %571 = vsyncpa [#allocation5], 1
    %s572 = scalar_lea.sflag [#allocation5], 1
    %573 = vsyncpa %s572, 1

</llo_original>
